<compile_context>
chip_gen: v7x
topology: tpu7x:2x2x1
jax: 0.10.0
libtpu: 0.0.40
codegen_flags: <defaults>
</compile_context>

<pallas_src>
import jax
import jax.numpy as jnp
from jax.experimental import pallas as pl
from jax.experimental.pallas import tpu as pltpu

HIDDEN = 64


def _round_up(x, m):
    return (x + m - 1) // m * m


def knot_nnet_kernel(x_ref, w1_ref, w23_ref, b_ref, out_ref):
    # x tile: (tb, input_size) at native feature width.
    x = x_ref[...].astype(jnp.float32)          # mirrors torch `x.float()`

    # Layer 1: relu(x @ W1 + b1).  W1 is (input_size, D) with hidden cols
    # zero-padded to D, so padded lanes contribute nothing.
    h1 = jnp.dot(x, w1_ref[...], preferred_element_type=jnp.float32) + b_ref[0]
    h1 = jnp.maximum(h1, 0.0)

    # Layer 2: relu(h1 @ W2 + b2).  Padded rows/cols of W2/b2 are zero -> exact.
    h2 = jnp.dot(h1, w23_ref[0], preferred_element_type=jnp.float32) + b_ref[1]
    h2 = jnp.maximum(h2, 0.0)

    # Fused heads: one MXU pass -> [policy | value | zero-pad] lane-dense slab.
    out_ref[...] = (
        jnp.dot(h2, w23_ref[1], preferred_element_type=jnp.float32) + b_ref[2]
    )


def pack_params(params, input_size, action_size):
    """Pack layer weights/biases into padded, MXU-friendly buffers (done once).

    Returns:
      w1  (input_size, D): fc1 weight (in, out), hidden cols zero-padded to D.
      w23 (2, D, D):       slot 0 = fc2, slot 1 = [fc_policy | fc_value] fused.
      b   (3, 1, D):       biases for fc1 / fc2 / fused head.
      D:  lane-padded width (>= 128).
    """
    hidden = params["w1"].shape[1]
    D = max(128, _round_up(hidden, 128), _round_up(action_size + 1, 128))

    w1 = jnp.zeros((input_size, D), jnp.float32)
    w1 = w1.at[:, :hidden].set(params["w1"])

    w23 = jnp.zeros((2, D, D), jnp.float32)
    w23 = w23.at[0, :hidden, :hidden].set(params["w2"])
    w23 = w23.at[1, :hidden, :action_size].set(params["wp"])
    w23 = w23.at[1, :hidden, action_size].set(params["wv"][:, 0])

    b = jnp.zeros((3, 1, D), jnp.float32)
    b = b.at[0, 0, :hidden].set(params["b1"])
    b = b.at[1, 0, :hidden].set(params["b2"])
    b = b.at[2, 0, :action_size].set(params["bp"])
    b = b.at[2, 0, action_size].set(params["bv"][0])
    return w1, w23, b, D


def knot_nnet_forward(x, w1, w23, b, action_size, *, tb=1024):
    """Full KnotNNet forward in one pallas_call.

    x: (B, input_size) any float dtype (cast to f32 in-kernel like `x.float()`).
    Returns (policy (B, action_size), value (B, 1)).
    """
    B, input_size = x.shape
    D = w23.shape[-1]

    # Batch tile: multiple of 8 sublanes; large tiles amortize per-step cost.
    rows = _round_up(B, 8)
    tb = max(8, min(tb, rows))
    # v7x megacore: for large batches make sure there are >= 2 grid steps so
    # the "parallel" axis can shard across both TensorCores.
    if rows >= 512 and pl.cdiv(B, tb) < 2:
        tb = _round_up(pl.cdiv(rows, 2), 8)

    grid = (pl.cdiv(B, tb),)

    flops = 2 * B * (input_size * D + 2 * D * D)
    bytes_accessed = (
        x.size * x.dtype.itemsize
        + (w1.size + w23.size + b.size) * 4
        + B * D * 4
    )

    out = pl.pallas_call(
        knot_nnet_kernel,
        out_shape=jax.ShapeDtypeStruct((B, D), jnp.float32),
        grid=grid,
        in_specs=[
            # x: batch-tiled at native feature width (full last dim -> legal).
            pl.BlockSpec((tb, input_size), lambda i: (i, 0)),
            # Weights / biases: constant block index -> stay VMEM-resident.
            pl.BlockSpec((input_size, D), lambda i: (0, 0)),
            pl.BlockSpec((2, D, D), lambda i: (0, 0, 0)),
            pl.BlockSpec((3, 1, D), lambda i: (0, 0, 0)),
        ],
        out_specs=pl.BlockSpec((tb, D), lambda i: (i, 0)),   # lane-dense slab
        compiler_params=pltpu.CompilerParams(
            dimension_semantics=("parallel",),
        ),
        cost_estimate=pl.CostEstimate(
            flops=flops, transcendentals=0, bytes_accessed=bytes_accessed),
    )(x, w1, w23, b)

    policy = out[:, :action_size]
    # tanh is needed only on the single value column; applying it here fuses
    # with the (B, 1) slice instead of running over the whole slab in-kernel.
    value = jnp.tanh(out[:, action_size:action_size + 1])
    return policy, value


def init_params(key, input_size, action_size, hidden=HIDDEN):
    """Deterministic synthetic init (PyTorch-like uniform fan-in scaling)."""
    ks = jax.random.split(key, 8)

    def lin(kw, kb, fan_in, fan_out):
        bound = 1.0 / jnp.sqrt(jnp.float32(fan_in))
        # stored as (in, out) == transposed nn.Linear weight
        w = jax.random.uniform(kw, (fan_in, fan_out), jnp.float32, -bound, bound)
        b = jax.random.uniform(kb, (fan_out,), jnp.float32, -bound, bound)
        return w, b

    w1, b1 = lin(ks[0], ks[1], input_size, hidden)
    w2, b2 = lin(ks[2], ks[3], hidden, hidden)
    wp, bp = lin(ks[4], ks[5], hidden, action_size)
    wv, bv = lin(ks[6], ks[7], hidden, 1)
    return {"w1": w1, "b1": b1, "w2": w2, "b2": b2,
            "wp": wp, "bp": bp, "wv": wv, "bv": bv}


if __name__ == "__main__":
    key = jax.random.PRNGKey(0)
    k_x, k_p = jax.random.split(key)

    # Small shapes implied by the module: a flat "canonical form" vector per
    # sample and a discrete action space.
    batch = 8
    input_size = 16     # len(game.get_canonical_form())
    action_size = 12    # game.get_action_size()

    x = jax.random.normal(k_x, (batch, input_size), jnp.float32)
    params = init_params(k_p, input_size, action_size)

    # Pack once (amortized across calls in real use), then run the kernel.
    w1, w23, b, D = pack_params(params, input_size, action_size)
    policy, value = knot_nnet_forward(x, w1, w23, b, action_size)
    jax.block_until_ready((policy, value))

    assert policy.shape == (batch, action_size)
    assert value.shape == (batch, 1)

    # Cross-check against plain JAX reference (f32 path keeps 1e-5 tolerance).
    h1 = jnp.maximum(x @ params["w1"] + params["b1"], 0.0)
    h2 = jnp.maximum(h1 @ params["w2"] + params["b2"], 0.0)
    pol_ref = h2 @ params["wp"] + params["bp"]
    val_ref = jnp.tanh(h2 @ params["wv"] + params["bv"])
    assert jnp.allclose(policy, pol_ref, atol=1e-5)
    assert jnp.allclose(value, val_ref, atol=1e-5)

    print("KERNEL_OK")
</pallas_src>

<mosaic_0001>
module attributes {stable_mosaic.version = 11 : i64} {
  func.func @knot_nnet_kernel(%arg0: i32, %arg1: memref<8x16xf32, #tpu.memory_space<vmem>>, %arg2: memref<16x128xf32, #tpu.memory_space<vmem>>, %arg3: memref<2x128x128xf32, #tpu.memory_space<vmem>>, %arg4: memref<3x1x128xf32, #tpu.memory_space<vmem>>, %arg5: memref<8x128xf32, #tpu.memory_space<vmem>>) attributes {dimension_semantics = [#tpu.dimension_semantics<parallel>], iteration_bounds = array<i64: 1>, scalar_prefetch = 0 : i64, scratch_operands = 0 : i64, tpu.core_type = #tpu.core_type<tc>, window_params = [{transform_indices = @transform_0, window_bounds = array<i64: 8, 16>}, {pipeline_mode = #tpu.pipeline_mode<synchronous>, transform_indices = @transform_1, window_bounds = array<i64: 16, 128>}, {pipeline_mode = #tpu.pipeline_mode<synchronous>, transform_indices = @transform_2, window_bounds = array<i64: 2, 128, 128>}, {pipeline_mode = #tpu.pipeline_mode<synchronous>, transform_indices = @transform_3, window_bounds = array<i64: 3, 1, 128>}, {transform_indices = @transform_4, window_bounds = array<i64: 8, 128>}]} {
    %c0 = arith.constant 0 : index
    %c0_0 = arith.constant 0 : index
    %0 = vector.load %arg1[%c0, %c0_0] : memref<8x16xf32, #tpu.memory_space<vmem>>, vector<8x16xf32>
    %c0_1 = arith.constant 0 : index
    %c0_2 = arith.constant 0 : index
    %1 = vector.load %arg2[%c0_1, %c0_2] : memref<16x128xf32, #tpu.memory_space<vmem>>, vector<16x128xf32>
    %cst = arith.constant dense<0.000000e+00> : vector<8x128xf32>
    %2 = tpu.matmul %0, %1, %cst {dimension_numbers = #tpu.dot_dimension_numbers<[1], [0], [0], [1], [0, 0, 1, 1], [], []>} : vector<8x16xf32>, vector<16x128xf32>, vector<8x128xf32> -> vector<8x128xf32>
    %c0_3 = arith.constant 0 : index
    %c0_4 = arith.constant 0 : index
    %c0_5 = arith.constant 0 : index
    %3 = vector.load %arg4[%c0_3, %c0_4, %c0_5] : memref<3x1x128xf32, #tpu.memory_space<vmem>>, vector<1x1x128xf32>
    %4 = vector.shape_cast %3 : vector<1x1x128xf32> to vector<1x128xf32>
    %5 = vector.broadcast %4 : vector<1x128xf32> to vector<8x128xf32>
    %6 = arith.addf %2, %5 : vector<8x128xf32>
    %cst_6 = arith.constant 0.000000e+00 : f32
    %7 = vector.broadcast %cst_6 : f32 to vector<8x128xf32>
    %8 = arith.maximumf %6, %7 : vector<8x128xf32>
    %c0_7 = arith.constant 0 : index
    %c0_8 = arith.constant 0 : index
    %c0_9 = arith.constant 0 : index
    %9 = vector.load %arg3[%c0_7, %c0_8, %c0_9] : memref<2x128x128xf32, #tpu.memory_space<vmem>>, vector<1x128x128xf32>
    %10 = vector.shape_cast %9 : vector<1x128x128xf32> to vector<128x128xf32>
    %cst_10 = arith.constant dense<0.000000e+00> : vector<8x128xf32>
    %11 = tpu.matmul %8, %10, %cst_10 {dimension_numbers = #tpu.dot_dimension_numbers<[1], [0], [0], [1], [0, 0, 1, 1], [], []>} : vector<8x128xf32>, vector<128x128xf32>, vector<8x128xf32> -> vector<8x128xf32>
    %c1 = arith.constant 1 : index
    %c0_11 = arith.constant 0 : index
    %c0_12 = arith.constant 0 : index
    %12 = vector.load %arg4[%c1, %c0_11, %c0_12] : memref<3x1x128xf32, #tpu.memory_space<vmem>>, vector<1x1x128xf32>
    %13 = vector.shape_cast %12 : vector<1x1x128xf32> to vector<1x128xf32>
    %14 = vector.broadcast %13 : vector<1x128xf32> to vector<8x128xf32>
    %15 = arith.addf %11, %14 : vector<8x128xf32>
    %cst_13 = arith.constant 0.000000e+00 : f32
    %16 = vector.broadcast %cst_13 : f32 to vector<8x128xf32>
    %17 = arith.maximumf %15, %16 : vector<8x128xf32>
    %c1_14 = arith.constant 1 : index
    %c0_15 = arith.constant 0 : index
    %c0_16 = arith.constant 0 : index
    %18 = vector.load %arg3[%c1_14, %c0_15, %c0_16] : memref<2x128x128xf32, #tpu.memory_space<vmem>>, vector<1x128x128xf32>
    %19 = vector.shape_cast %18 : vector<1x128x128xf32> to vector<128x128xf32>
    %cst_17 = arith.constant dense<0.000000e+00> : vector<8x128xf32>
    %20 = tpu.matmul %17, %19, %cst_17 {dimension_numbers = #tpu.dot_dimension_numbers<[1], [0], [0], [1], [0, 0, 1, 1], [], []>} : vector<8x128xf32>, vector<128x128xf32>, vector<8x128xf32> -> vector<8x128xf32>
    %c2 = arith.constant 2 : index
    %c0_18 = arith.constant 0 : index
    %c0_19 = arith.constant 0 : index
    %21 = vector.load %arg4[%c2, %c0_18, %c0_19] : memref<3x1x128xf32, #tpu.memory_space<vmem>>, vector<1x1x128xf32>
    %22 = vector.shape_cast %21 : vector<1x1x128xf32> to vector<1x128xf32>
    %23 = vector.broadcast %22 : vector<1x128xf32> to vector<8x128xf32>
    %24 = arith.addf %20, %23 : vector<8x128xf32>
    %c0_20 = arith.constant 0 : index
    %c0_21 = arith.constant 0 : index
    %25 = vector.load %arg5[%c0_20, %c0_21] : memref<8x128xf32, #tpu.memory_space<vmem>>, vector<8x128xf32>
    tpu.vector_store %arg5[%c0_20, %c0_21], %24 {strides = array<i32>} : memref<8x128xf32, #tpu.memory_space<vmem>>, vector<8x128xf32>,
    return
  }
  func.func @transform_0(%arg0: i32) -> (i32, i32) {
    %c0_i32 = arith.constant 0 : i32
    %c0_i32_0 = arith.constant 0 : i32
    return %arg0, %c0_i32 : i32, i32
  }
  func.func @transform_1(%arg0: i32) -> (i32, i32) {
    %c0_i32 = arith.constant 0 : i32
    %c0_i32_0 = arith.constant 0 : i32
    %c0_i32_1 = arith.constant 0 : i32
    return %c0_i32, %c0_i32_0 : i32, i32
  }
  func.func @transform_2(%arg0: i32) -> (i32, i32, i32) {
    %c0_i32 = arith.constant 0 : i32
    %c0_i32_0 = arith.constant 0 : i32
    %c0_i32_1 = arith.constant 0 : i32
    %c0_i32_2 = arith.constant 0 : i32
    return %c0_i32, %c0_i32_0, %c0_i32_1 : i32, i32, i32
  }
  func.func @transform_3(%arg0: i32) -> (i32, i32, i32) {
    %c0_i32 = arith.constant 0 : i32
    %c0_i32_0 = arith.constant 0 : i32
    %c0_i32_1 = arith.constant 0 : i32
    %c0_i32_2 = arith.constant 0 : i32
    return %c0_i32, %c0_i32_0, %c0_i32_1 : i32, i32, i32
  }
  func.func @transform_4(%arg0: i32) -> (i32, i32) {
    %c0_i32 = arith.constant 0 : i32
    %c0_i32_0 = arith.constant 0 : i32
    return %arg0, %c0_i32 : i32, i32
  }
}

</mosaic_0001>

<llo_original>
// kernel: tpu_custom_call.1
$region0: #{tpu_custom_call.1}
  #allocation0 [shape = 'u32[]', space=smem, size = 0x4, offset = 0x4, fixed_abs, tag = 'smem constant byte address 0x4 - core index']
  #allocation1 [shape = 'u32[144,128]{1,0:T(1,128)}', space=vmem, size = 0x12000, scoped, tag = 'internal scratch']
  %s0 = inlined_call_operand.hbm [shape: f32[8,16], index: 0, kind: input, shape index: {}]
  %s1 = inlined_call_operand.hbm [shape: f32[16,128], index: 1, kind: input, shape index: {}]
  %s2 = inlined_call_operand.hbm [shape: f32[2,128,128], index: 2, kind: input, shape index: {}]
  %s3 = inlined_call_operand.vmem [shape: f32[3,1,128], index: 3, kind: input, shape index: {}]
  %s4 = inlined_call_operand.hbm [shape: f32[8,128], index: 4, kind: output, shape index: {}]
  %s5 = sld [smem:[#allocation0]]
  $region38: #{tpu_custom_call.1} parent=0
    _
  %s7 = ssub.s32 1, %s5
  %s8 = scalar_select 0, %s7, %s5
  $region1: #{tpu_custom_call.1} parent=0
    #allocation2 [shape = 'u8[4096]{0}', space=vmem, size = 0x1000, scoped, tag = 'input window, operand 0, single buffered']
    #allocation3 [shape = 's32[1]{0}', space=sflag, size = 0x4, scoped, tag = 'scoped memory for tpu_custom_call.1']
    #allocation4 [shape = 's32[1]{0}', space=sflag, size = 0x4, scoped, tag = 'scoped memory for tpu_custom_call.1']
    #allocation5 [shape = 'u8[8192]{0}', space=vmem, size = 0x2000, scoped, tag = 'input window, operand 1, single buffered']
    #allocation6 [shape = 's32[1]{0}', space=sflag, size = 0x4, scoped, tag = 'scoped memory for tpu_custom_call.1']
    #allocation7 [shape = 'u8[131072]{0}', space=vmem, size = 0x20000, scoped, tag = 'input window, operand 2, single buffered']
    #allocation8 [shape = 'u8[4096]{0}', space=vmem, size = 0x1000, scoped, tag = 'output window, operand 0, single buffered']
    %9 = vsyncpa [#allocation3], 0
    %10 = vsyncpa [#allocation6], 0
    %11 = vsyncpa [#allocation4], 0
    // Predicated region
    $region2: #{tpu_custom_call.1} parent=1 // pred_check
      _
    $region3: #{tpu_custom_call.1} parent=1 // pred_check_branch
      %13 = sbr.rel (0) target = $region5
    $region4: #{tpu_custom_call.1} parent=1 // pred_region
      %s15 = ssub.s32 128, 128
      %16 = vsyncadd [#allocation3], %s15
      %s18 = sshll.u32 [#allocation2], 4
      %s19 = int_to_ptr.vmem [resolvable:$true] %s18
      %21 = dma.hbm_to_vmem [thread:$0]  %s0, 128, %s19, [#allocation3]
    $region5: #{tpu_custom_call.1} parent=1 // pred_fallthru
      _
    // Predicated region
    $region6: #{tpu_custom_call.1} parent=1 // pred_check
      _
    $region7: #{tpu_custom_call.1} parent=1 // pred_check_branch
      %23 = sbr.rel (0) target = $region9
    $region8: #{tpu_custom_call.1} parent=1 // pred_region
      %s25 = ssub.s32 256, 256
      %26 = vsyncadd [#allocation6], %s25
      %s27 = sshll.u32 [#allocation5], 4
      %s28 = int_to_ptr.vmem [resolvable:$true] %s27
      %33 = dma.hbm_to_vmem [thread:$0]  %s1, 256, %s28, [#allocation6], 128, 128, 8
    $region9: #{tpu_custom_call.1} parent=1 // pred_fallthru
      _
    // Predicated region
    $region10: #{tpu_custom_call.1} parent=1 // pred_check
      _
    $region11: #{tpu_custom_call.1} parent=1 // pred_check_branch
      %35 = sbr.rel (0) target = $region13
    $region12: #{tpu_custom_call.1} parent=1 // pred_region
      %s37 = ssub.s32 4096, 4096
      %38 = vsyncadd [#allocation6], %s37
      %s39 = sshll.u32 [#allocation7], 4
      %s40 = int_to_ptr.vmem [resolvable:$true] %s39
      %45 = dma.hbm_to_vmem [thread:$0]  %s2, 4096, %s40, [#allocation6], 128, 128, 8
    $region13: #{tpu_custom_call.1} parent=1 // pred_fallthru
      _
    // Predicated region
    $region14: #{tpu_custom_call.1} parent=1 // pred_check
      _
    $region15: #{tpu_custom_call.1} parent=1 // pred_check_branch
      %47 = sbr.rel (0) target = $region17
    $region16: #{tpu_custom_call.1} parent=1 // pred_region
      _
    $region17: #{tpu_custom_call.1} parent=1 // pred_fallthru
      _
    // Predicated region
    $region18: #{tpu_custom_call.1} parent=1 // pred_check
      _
    $region19: #{tpu_custom_call.1} parent=1 // pred_check_branch
      %49 = sbr.rel (0) target = $region21
    $region20: #{tpu_custom_call.1} parent=1 // pred_region
      %50 = dma.done [#allocation3], 128
    $region21: #{tpu_custom_call.1} parent=1 // pred_fallthru
      _
    // Predicated region
    $region22: #{tpu_custom_call.1} parent=1 // pred_check
      _
    $region23: #{tpu_custom_call.1} parent=1 // pred_check_branch
      %52 = sbr.rel (0) target = $region25
    $region24: #{tpu_custom_call.1} parent=1 // pred_region
      %53 = dma.done [#allocation6], 256
    $region25: #{tpu_custom_call.1} parent=1 // pred_fallthru
      _
    // Predicated region
    $region26: #{tpu_custom_call.1} parent=1 // pred_check
      _
    $region27: #{tpu_custom_call.1} parent=1 // pred_check_branch
      %55 = sbr.rel (0) target = $region29
    $region28: #{tpu_custom_call.1} parent=1 // pred_region
      %56 = dma.done [#allocation6], 4096
    $region29: #{tpu_custom_call.1} parent=1 // pred_fallthru
      _
    %v57 = vld [vmem:[#allocation2] sm:$0xff]
    %v58 = vld [vmem:[#allocation5] sm:$0xff]
    %v59 = vld [vmem:[#allocation5 + $0x8] sm:$0xff]
    %v60 = vld [vmem:[%s3] sm:$0x1]
    %v62 = vlaneseq
    %v63 = vshrl.u32 %v62, 7
    %v64 = vsub.s32 0, %v63
    %v65 = vrot.slane %v60, %v64
    %vm67 = vcmask 130048
    %v69 = vsel %vm67, %v57, 0
    %71 = vmatprep.subr.mxu0 0.0
    %72 = vmatpush1.msra.mxu0 %v58
    %73 = vmatprep.subr.mxu0 0.0
    %74 = vmatpush1.msra.mxu0 %v59
    %75 = vmatprep.subr.mxu0 0.0
    %76 = vmatpush1.msra.mxu0 0.0
    %77 = vmatprep.subr.mxu0 0.0
    %78 = vmatpush1.msra.mxu0 0.0
    %79 = vmatprep.subr.mxu0 0.0
    %80 = vmatpush1.msra.mxu0 0.0
    %81 = vmatprep.subr.mxu0 0.0
    %82 = vmatpush1.msra.mxu0 0.0
    %83 = vmatprep.subr.mxu0 0.0
    %84 = vmatpush1.msra.mxu0 0.0
    %85 = vmatprep.subr.mxu0 0.0
    %86 = vmatpush1.msra.mxu0 0.0
    %87 = vmatprep.subr.mxu0 0.0
    %88 = vmatpush1.msra.mxu0 0.0
    %89 = vmatprep.subr.mxu0 0.0
    %90 = vmatpush1.msra.mxu0 0.0
    %91 = vmatprep.subr.mxu0 0.0
    %92 = vmatpush1.msra.mxu0 0.0
    %93 = vmatprep.subr.mxu0 0.0
    %94 = vmatpush1.msra.mxu0 0.0
    %95 = vmatprep.subr.mxu0 0.0
    %96 = vmatpush1.msra.mxu0 0.0
    %97 = vmatprep.subr.mxu0 0.0
    %98 = vmatpush1.msra.mxu0 0.0
    %99 = vmatprep.subr.mxu0 0.0
    %100 = vmatpush1.msra.mxu0 0.0
    %101 = vmatprep.subr.mxu0 0.0
    %102 = vmatpush1.msra.mxu0 0.0
    %103 = vmatprep.subr.mxu0 0.0
    %104 = vmatpush1.msra.mxu0 0.0
    %105 = vmatprep.subr.mxu0 0.0
    %106 = vmatpush1.msra.mxu0 0.0
    %107 = vmatprep.subr.mxu0 0.0
    %108 = vmatpush1.msra.mxu0 0.0
    %109 = vmatprep.subr.mxu0 0.0
    %110 = vmatpush1.msra.mxu0 0.0
    %111 = vmatprep.subr.mxu0 0.0
    %112 = vmatpush1.msra.mxu0 0.0
    %113 = vmatprep.subr.mxu0 0.0
    %114 = vmatpush1.msra.mxu0 0.0
    %115 = vmatprep.subr.mxu0 0.0
    %116 = vmatpush1.msra.mxu0 0.0
    %117 = vmatprep.subr.mxu0 0.0
    %118 = vmatpush1.msra.mxu0 0.0
    %119 = vmatprep.subr.mxu0 0.0
    %120 = vmatpush1.msra.mxu0 0.0
    %121 = vmatprep.subr.mxu0 0.0
    %122 = vmatpush1.msra.mxu0 0.0
    %123 = vmatprep.subr.mxu0 0.0
    %124 = vmatpush1.msra.mxu0 0.0
    %125 = vmatprep.subr.mxu0 0.0
    %126 = vmatpush1.msra.mxu0 0.0
    %127 = vmatprep.subr.mxu0 0.0
    %128 = vmatpush1.msra.mxu0 0.0
    %129 = vmatprep.subr.mxu0 0.0
    %130 = vmatpush1.msra.mxu0 0.0
    %131 = vmatprep.subr.mxu0 0.0
    %132 = vmatpush1.msra.mxu0 0.0
    %133 = vmatprep.subr.mxu0 0.0
    %134 = vmatpush1.msra.mxu0 0.0
    %135 = vmatprep.mubr.f32.mxu0 0.0
    %136 = vmatmul.mubr.f32.gmra.mrb[0].mxu0 %v69
    %v137 = vpop.f32.mrb[0].mxu0
    %v138 = vadd.f32 %v65, %v137
    %v139 = vpop.f32.mrb[0].mxu0
    %140 = vdwg.mxu0
    %v141 = vmax.f32 %v138, 0.0
    %v142 = vld [vmem:[#allocation7] sm:$0xff]
    %v143 = vld [vmem:[#allocation7 + $0x8] sm:$0xff]
    %v144 = vld [vmem:[#allocation7 + $0x10] sm:$0xff]
    %v145 = vld [vmem:[#allocation7 + $0x18] sm:$0xff]
    %v146 = vld [vmem:[#allocation7 + $0x20] sm:$0xff]
    %v147 = vld [vmem:[#allocation7 + $0x28] sm:$0xff]
    %v148 = vld [vmem:[#allocation7 + $0x30] sm:$0xff]
    %v149 = vld [vmem:[#allocation7 + $0x38] sm:$0xff]
    %v150 = vld [vmem:[#allocation7 + $0x40] sm:$0xff]
    %v151 = vld [vmem:[#allocation7 + $0x48] sm:$0xff]
    %v152 = vld [vmem:[#allocation7 + $0x50] sm:$0xff]
    %v153 = vld [vmem:[#allocation7 + $0x58] sm:$0xff]
    %v154 = vld [vmem:[#allocation7 + $0x60] sm:$0xff]
    %v155 = vld [vmem:[#allocation7 + $0x68] sm:$0xff]
    %v156 = vld [vmem:[#allocation7 + $0x70] sm:$0xff]
    %v157 = vld [vmem:[#allocation7 + $0x78] sm:$0xff]
    %s158 = scalar_lea.vmem %s3, 1
    %v159 = vld [vmem:[%s158] sm:$0x1]
    %v161 = vlaneseq
    %v162 = vshrl.u32 %v161, 7
    %v163 = vsub.s32 0, %v162
    %v164 = vrot.slane %v159, %v163
    %166 = vmatprep.subr.mxu0 0.0
    %167 = vmatpush1.msra.mxu0 %v142
    %168 = vmatprep.subr.mxu0 0.0
    %169 = vmatpush1.msra.mxu0 %v143
    %170 = vmatprep.subr.mxu0 0.0
    %171 = vmatpush1.msra.mxu0 %v144
    %172 = vmatprep.subr.mxu0 0.0
    %173 = vmatpush1.msra.mxu0 %v145
    %174 = vmatprep.subr.mxu0 0.0
    %175 = vmatpush1.msra.mxu0 %v146
    %176 = vmatprep.subr.mxu0 0.0
    %177 = vmatpush1.msra.mxu0 %v147
    %178 = vmatprep.subr.mxu0 0.0
    %179 = vmatpush1.msra.mxu0 %v148
    %180 = vmatprep.subr.mxu0 0.0
    %181 = vmatpush1.msra.mxu0 %v149
    %182 = vmatprep.subr.mxu0 0.0
    %183 = vmatpush1.msra.mxu0 %v150
    %184 = vmatprep.subr.mxu0 0.0
    %185 = vmatpush1.msra.mxu0 %v151
    %186 = vmatprep.subr.mxu0 0.0
    %187 = vmatpush1.msra.mxu0 %v152
    %188 = vmatprep.subr.mxu0 0.0
    %189 = vmatpush1.msra.mxu0 %v153
    %190 = vmatprep.subr.mxu0 0.0
    %191 = vmatpush1.msra.mxu0 %v154
    %192 = vmatprep.subr.mxu0 0.0
    %193 = vmatpush1.msra.mxu0 %v155
    %194 = vmatprep.subr.mxu0 0.0
    %195 = vmatpush1.msra.mxu0 %v156
    %196 = vmatprep.subr.mxu0 0.0
    %197 = vmatpush1.msra.mxu0 %v157
    %198 = vmatprep.subr.mxu0 0.0
    %199 = vmatpush1.msra.mxu0 0.0
    %200 = vmatprep.subr.mxu0 0.0
    %201 = vmatpush1.msra.mxu0 0.0
    %202 = vmatprep.subr.mxu0 0.0
    %203 = vmatpush1.msra.mxu0 0.0
    %204 = vmatprep.subr.mxu0 0.0
    %205 = vmatpush1.msra.mxu0 0.0
    %206 = vmatprep.subr.mxu0 0.0
    %207 = vmatpush1.msra.mxu0 0.0
    %208 = vmatprep.subr.mxu0 0.0
    %209 = vmatpush1.msra.mxu0 0.0
    %210 = vmatprep.subr.mxu0 0.0
    %211 = vmatpush1.msra.mxu0 0.0
    %212 = vmatprep.subr.mxu0 0.0
    %213 = vmatpush1.msra.mxu0 0.0
    %214 = vmatprep.subr.mxu0 0.0
    %215 = vmatpush1.msra.mxu0 0.0
    %216 = vmatprep.subr.mxu0 0.0
    %217 = vmatpush1.msra.mxu0 0.0
    %218 = vmatprep.subr.mxu0 0.0
    %219 = vmatpush1.msra.mxu0 0.0
    %220 = vmatprep.subr.mxu0 0.0
    %221 = vmatpush1.msra.mxu0 0.0
    %222 = vmatprep.subr.mxu0 0.0
    %223 = vmatpush1.msra.mxu0 0.0
    %224 = vmatprep.subr.mxu0 0.0
    %225 = vmatpush1.msra.mxu0 0.0
    %226 = vmatprep.subr.mxu0 0.0
    %227 = vmatpush1.msra.mxu0 0.0
    %228 = vmatprep.subr.mxu0 0.0
    %229 = vmatpush1.msra.mxu0 0.0
    %230 = vmatprep.mubr.f32.mxu0 0.0
    %231 = vmatmul.mubr.f32.gmra.mrb[0].mxu0 %v141
    %v232 = vpop.f32.mrb[0].mxu0
    %v233 = vadd.f32 %v164, %v232
    %v234 = vpop.f32.mrb[0].mxu0
    %235 = vdwg.mxu0
    %v236 = vmax.f32 %v233, 0.0
    %s237 = scalar_lea.vmem [#allocation7], 128
    %v238 = vld [vmem:[%s237] sm:$0xff]
    %v239 = vld [vmem:[%s237 + $0x8] sm:$0xff]
    %v240 = vld [vmem:[%s237 + $0x10] sm:$0xff]
    %v241 = vld [vmem:[%s237 + $0x18] sm:$0xff]
    %v242 = vld [vmem:[%s237 + $0x20] sm:$0xff]
    %v243 = vld [vmem:[%s237 + $0x28] sm:$0xff]
    %v244 = vld [vmem:[%s237 + $0x30] sm:$0xff]
    %v245 = vld [vmem:[%s237 + $0x38] sm:$0xff]
    %v246 = vld [vmem:[%s237 + $0x40] sm:$0xff]
    %v247 = vld [vmem:[%s237 + $0x48] sm:$0xff]
    %v248 = vld [vmem:[%s237 + $0x50] sm:$0xff]
    %v249 = vld [vmem:[%s237 + $0x58] sm:$0xff]
    %v250 = vld [vmem:[%s237 + $0x60] sm:$0xff]
    %v251 = vld [vmem:[%s237 + $0x68] sm:$0xff]
    %v252 = vld [vmem:[%s237 + $0x70] sm:$0xff]
    %v253 = vld [vmem:[%s237 + $0x78] sm:$0xff]
    %s254 = scalar_lea.vmem %s3, 2
    %v255 = vld [vmem:[%s254] sm:$0x1]
    %v257 = vlaneseq
    %v258 = vshrl.u32 %v257, 7
    %v259 = vsub.s32 0, %v258
    %v260 = vrot.slane %v255, %v259
    %262 = vmatprep.subr.mxu0 0.0
    %263 = vmatpush1.msra.mxu0 %v238
    %264 = vmatprep.subr.mxu0 0.0
    %265 = vmatpush1.msra.mxu0 %v239
    %266 = vmatprep.subr.mxu0 0.0
    %267 = vmatpush1.msra.mxu0 %v240
    %268 = vmatprep.subr.mxu0 0.0
    %269 = vmatpush1.msra.mxu0 %v241
    %270 = vmatprep.subr.mxu0 0.0
    %271 = vmatpush1.msra.mxu0 %v242
    %272 = vmatprep.subr.mxu0 0.0
    %273 = vmatpush1.msra.mxu0 %v243
    %274 = vmatprep.subr.mxu0 0.0
    %275 = vmatpush1.msra.mxu0 %v244
    %276 = vmatprep.subr.mxu0 0.0
    %277 = vmatpush1.msra.mxu0 %v245
    %278 = vmatprep.subr.mxu0 0.0
    %279 = vmatpush1.msra.mxu0 %v246
    %280 = vmatprep.subr.mxu0 0.0
    %281 = vmatpush1.msra.mxu0 %v247
    %282 = vmatprep.subr.mxu0 0.0
    %283 = vmatpush1.msra.mxu0 %v248
    %284 = vmatprep.subr.mxu0 0.0
    %285 = vmatpush1.msra.mxu0 %v249
    %286 = vmatprep.subr.mxu0 0.0
    %287 = vmatpush1.msra.mxu0 %v250
    %288 = vmatprep.subr.mxu0 0.0
    %289 = vmatpush1.msra.mxu0 %v251
    %290 = vmatprep.subr.mxu0 0.0
    %291 = vmatpush1.msra.mxu0 %v252
    %292 = vmatprep.subr.mxu0 0.0
    %293 = vmatpush1.msra.mxu0 %v253
    %294 = vmatprep.subr.mxu0 0.0
    %295 = vmatpush1.msra.mxu0 0.0
    %296 = vmatprep.subr.mxu0 0.0
    %297 = vmatpush1.msra.mxu0 0.0
    %298 = vmatprep.subr.mxu0 0.0
    %299 = vmatpush1.msra.mxu0 0.0
    %300 = vmatprep.subr.mxu0 0.0
    %301 = vmatpush1.msra.mxu0 0.0
    %302 = vmatprep.subr.mxu0 0.0
    %303 = vmatpush1.msra.mxu0 0.0
    %304 = vmatprep.subr.mxu0 0.0
    %305 = vmatpush1.msra.mxu0 0.0
    %306 = vmatprep.subr.mxu0 0.0
    %307 = vmatpush1.msra.mxu0 0.0
    %308 = vmatprep.subr.mxu0 0.0
    %309 = vmatpush1.msra.mxu0 0.0
    %310 = vmatprep.subr.mxu0 0.0
    %311 = vmatpush1.msra.mxu0 0.0
    %312 = vmatprep.subr.mxu0 0.0
    %313 = vmatpush1.msra.mxu0 0.0
    %314 = vmatprep.subr.mxu0 0.0
    %315 = vmatpush1.msra.mxu0 0.0
    %316 = vmatprep.subr.mxu0 0.0
    %317 = vmatpush1.msra.mxu0 0.0
    %318 = vmatprep.subr.mxu0 0.0
    %319 = vmatpush1.msra.mxu0 0.0
    %320 = vmatprep.subr.mxu0 0.0
    %321 = vmatpush1.msra.mxu0 0.0
    %322 = vmatprep.subr.mxu0 0.0
    %323 = vmatpush1.msra.mxu0 0.0
    %324 = vmatprep.subr.mxu0 0.0
    %325 = vmatpush1.msra.mxu0 0.0
    %326 = vmatprep.mubr.f32.mxu0 0.0
    %327 = vmatmul.mubr.f32.gmra.mrb[0].mxu0 %v236
    %v328 = vpop.f32.mrb[0].mxu0
    %v329 = vadd.f32 %v260, %v328
    %v330 = vpop.f32.mrb[0].mxu0
    %331 = vdwg.mxu0
    %332 = vst [vmem:[#allocation8] sm:$0xff] %v329
    // Predicated region
    $region30: #{tpu_custom_call.1} parent=1 // pred_check
      _
    $region31: #{tpu_custom_call.1} parent=1 // pred_check_branch
      %334 = sbr.rel (0) target = $region33
    $region32: #{tpu_custom_call.1} parent=1 // pred_region
      %s336 = ssub.s32 128, 128
      %337 = vsyncadd [#allocation4], %s336
      %s339 = sshll.u32 [#allocation8], 4
      %s340 = int_to_ptr.vmem [resolvable:$true] %s339
      %342 = dma.vmem_to_hbm [thread:$0]  %s340, 128, %s4, [#allocation4]
    $region33: #{tpu_custom_call.1} parent=1 // pred_fallthru
      _
    // Predicated region
    $region34: #{tpu_custom_call.1} parent=1 // pred_check
      _
    $region35: #{tpu_custom_call.1} parent=1 // pred_check_branch
      %344 = sbr.rel (0) target = $region37
    $region36: #{tpu_custom_call.1} parent=1 // pred_region
      %345 = dma.done [#allocation4], 128
    $region37: #{tpu_custom_call.1} parent=1 // pred_fallthru
      _
    %346 = vsyncpa [#allocation3], 1
    %347 = vsyncpa [#allocation6], 1
    %348 = vsyncpa [#allocation4], 1

</llo_original>
